<compile_context>
chip_gen: v7x
topology: tpu7x:2x2x1
jax: 0.10.0
libtpu: 0.0.40
codegen_flags: <defaults>
</compile_context>

<pallas_src>
import functools

import jax
import jax.numpy as jnp
from jax.experimental import pallas as pl
from jax.experimental.pallas import tpu as pltpu

_MIB = 1024 * 1024
_CONTRACT_LAST = (((1,), (1,)), ((), ()))  # contract last dim of both operands


# ----------------------------------------------------------------------------
# In-kernel helpers
# ----------------------------------------------------------------------------

def _sigmoid(s):
    # sigmoid(x) == 0.5 * tanh(x / 2) + 0.5 : a single EUP transcendental per
    # element (vs. exp + full-precision divide), so the EUP slot does not
    # become the new ceiling once the writeback is halved with bf16 output.
    return 0.5 * jnp.tanh(0.5 * s) + 0.5


def _single_block_kernel(z_ref, o_ref):
    # z_ref: (N, D) whole latent matrix in VMEM; o_ref: (N, N).
    s = jax.lax.dot_general(
        z_ref[...], z_ref[...],
        dimension_numbers=_CONTRACT_LAST,
        preferred_element_type=jnp.float32,
    )
    o_ref[...] = _sigmoid(s).astype(o_ref.dtype)


def _tiled_kernel_stream(zr_ref, zc_ref, o_ref):
    # zr_ref: (tm, D) row tile, zc_ref: (tn, D) column tile, o_ref: (tm, tn).
    s = jax.lax.dot_general(
        zr_ref[...], zc_ref[...],
        dimension_numbers=_CONTRACT_LAST,
        preferred_element_type=jnp.float32,
    )
    o_ref[...] = _sigmoid(s).astype(o_ref.dtype)


def _tiled_kernel_resident(zr_ref, zall_ref, o_ref, *, tn):
    # zr_ref: (tm, D) row tile, zall_ref: (N_pad, D) full z resident in VMEM.
    #
    # NOTE: partial last row/column blocks may bring uninitialized (padded)
    # rows into the operands.  Every output element depends only on its own
    # row/column, so that garbage only lands in the output region Pallas clips
    # on writeback.  Do NOT add cross-tile reductions here without masking.
    j = pl.program_id(1)
    col_start = pl.multiple_of(j * tn, tn)
    zc = zall_ref[pl.ds(col_start, tn), :]
    s = jax.lax.dot_general(
        zr_ref[...], zc,
        dimension_numbers=_CONTRACT_LAST,
        preferred_element_type=jnp.float32,
    )
    o_ref[...] = _sigmoid(s).astype(o_ref.dtype)


# ----------------------------------------------------------------------------
# Host-side helpers
# ----------------------------------------------------------------------------

def _round_up(x, m):
    return ((x + m - 1) // m) * m


def _vmem_tile_bytes(rows, cols, itemsize, buffers):
    """Real VMEM footprint of a (rows, cols) operand: the last dim lane-pads
    to 128, the second-to-last sublane-pads to 8, times the pipeline buffer
    count (BlockSpec operands are double-buffered by default)."""
    return (_round_up(max(rows, 1), 8)
            * _round_up(max(cols, 1), 128)
            * itemsize * buffers)


def _cost(n, d, z_itemsize, out_itemsize, col_reads):
    """Honest scheduling hint: N^2 writeback + row read + column (re-)reads."""
    return pl.CostEstimate(
        flops=2 * n * n * d,
        transcendentals=n * n,                       # one tanh per output elem
        bytes_accessed=(n * n * out_itemsize
                        + n * d * z_itemsize
                        + col_reads * n * d * z_itemsize),
    )


def _resident_col_spec(n_pad, d, single_buffer):
    index_map = lambda i, j: (0, 0)
    if single_buffer:
        try:
            # Constant index_map -> nothing to pipeline; a single buffer halves
            # the resident operand's VMEM footprint (matters most on v7x).
            return pl.BlockSpec((n_pad, d), index_map,
                                pipeline_mode=pl.Buffered(1))
        except Exception:  # older/newer API drift: fall back to default 2-deep
            pass
    return pl.BlockSpec((n_pad, d), index_map)


@functools.lru_cache(maxsize=1)
def _tpu_generation_config():
    """Per-generation tile / VMEM settings.
    v5e & v6e: 128 MiB VMEM, 1 TC.  v7x: 64 MiB VMEM per TC, 2 TCs."""
    vmem_cap = None
    try:
        info = pltpu.get_tpu_info()
        for attr in ("vmem_capacity_bytes", "vmem_bytes", "vmem_size_bytes"):
            val = getattr(info, attr, None)
            if val:
                vmem_cap = int(val)
                break
    except Exception:
        vmem_cap = None
    if vmem_cap is None:
        # Unknown generation: conservative settings, valid everywhere.
        return dict(tm=512, tn=1024, vmem_limit_bytes=32 * _MIB,
                    single_block_max_n=512)
    if vmem_cap >= 100 * _MIB:
        # v5e / v6e: big tiles amortize the ~0.35us per-grid-step overhead and
        # lengthen writeback DMA bursts.
        return dict(tm=1024, tn=2048, vmem_limit_bytes=64 * _MIB,
                    single_block_max_n=1024)
    # v7x-class: cap output tiles at ~4 MiB f32, keep scoped VMEM <= 48 MiB,
    # and lower the single-block cutoff so mid-size N runs on the 2-axis
    # "parallel" grid and both TensorCores are engaged.
    return dict(tm=512, tn=2048, vmem_limit_bytes=48 * _MIB,
                single_block_max_n=512)


# ----------------------------------------------------------------------------
# pallas_call wrappers
# ----------------------------------------------------------------------------

@functools.partial(jax.jit, static_argnames=("out_dtype",))
def _decode_single_block(z, *, out_dtype=jnp.float32):
    """Whole (N, N) output as one block. For small N (output fits VMEM)."""
    n, d = z.shape
    return pl.pallas_call(
        _single_block_kernel,
        out_shape=jax.ShapeDtypeStruct((n, n), out_dtype),
        cost_estimate=_cost(n, d, z.dtype.itemsize,
                            jnp.dtype(out_dtype).itemsize, col_reads=0),
    )(z)


@functools.partial(
    jax.jit,
    static_argnames=("tm", "tn", "out_dtype", "resident_cols",
                     "vmem_limit_bytes", "single_buffer_resident"))
def _decode_tiled(z, *, tm=512, tn=1024, out_dtype=jnp.float32,
                  resident_cols=None, vmem_limit_bytes=32 * _MIB,
                  single_buffer_resident=True):
    """Tiled sigmoid(z @ z.T) with a pl.cdiv grid (arbitrary N >= 128)."""
    n, d = z.shape
    if n < 128:
        raise ValueError("use the single-block path for N < 128")
    # Clamp tile sizes so they never exceed N while staying (8,128)-aligned.
    tm = min(tm, (n // 8) * 8)
    tn = min(tn, (n // 128) * 128)
    if tm % 8 != 0 or tn % 128 != 0:
        raise ValueError("tm must be a multiple of 8, tn a multiple of 128")

    grid = (pl.cdiv(n, tm), pl.cdiv(n, tn))
    n_pad = grid[1] * tn
    z_itemsize = z.dtype.itemsize
    out_itemsize = jnp.dtype(out_dtype).itemsize

    # Resident-column decision with the REAL VMEM footprint (lane padding of
    # the last dim to 128 + pipeline buffer counts), against the scoped limit.
    col_buffers = 1 if single_buffer_resident else 2
    fixed_bytes = (_vmem_tile_bytes(tm, tn, out_itemsize, 2)   # output tiles
                   + _vmem_tile_bytes(tm, d, z_itemsize, 2))   # row tiles
    resident_bytes = _vmem_tile_bytes(n_pad, d, z_itemsize, col_buffers)
    if resident_cols is None:
        budget = int(0.85 * vmem_limit_bytes)
        resident_cols = fixed_bytes + resident_bytes <= budget

    row_spec = pl.BlockSpec((tm, d), lambda i, j: (i, 0))
    out_spec = pl.BlockSpec((tm, tn), lambda i, j: (i, j))

    if resident_cols:
        # Pad rows up to a multiple of tn so the in-kernel pl.ds slice never
        # goes out of bounds; padded rows only affect output columns that are
        # clipped on writeback.
        z_cols = z if n_pad == n else jnp.pad(z, ((0, n_pad - n), (0, 0)))
        col_spec = _resident_col_spec(n_pad, d, single_buffer_resident)
        kernel = functools.partial(_tiled_kernel_resident, tn=tn)
        col_reads = 1
    else:
        z_cols = z
        col_spec = pl.BlockSpec((tn, d), lambda i, j: (j, 0))
        kernel = _tiled_kernel_stream
        col_reads = grid[0]  # column tiles re-stream once per row block

    # TODO(synk): for compute-bound cases (large D on v5e) cast the dot
    # operands to bf16 while keeping the f32 accumulator; neutral at small D.
    return pl.pallas_call(
        kernel,
        out_shape=jax.ShapeDtypeStruct((n, n), out_dtype),
        grid_spec=pltpu.PrefetchScalarGridSpec(
            num_scalar_prefetch=0,
            grid=grid,
            in_specs=[row_spec, col_spec],
            out_specs=out_spec,
        ),
        compiler_params=pltpu.CompilerParams(
            dimension_semantics=("parallel", "parallel"),
            vmem_limit_bytes=vmem_limit_bytes,
        ),
        cost_estimate=_cost(n, d, z_itemsize, out_itemsize, col_reads),
    )(z, z_cols)


def _decode_tiled_safe(z, **kwargs):
    """Try the single-buffered resident-operand variant first; if this JAX
    build rejects the pipeline_mode during lowering, retry with the default
    double-buffered spec (identical numerics, slightly larger footprint)."""
    if kwargs.get("single_buffer_resident", True):
        try:
            return _decode_tiled(z, **{**kwargs, "single_buffer_resident": True})
        except Exception:
            pass
    return _decode_tiled(z, **{**kwargs, "single_buffer_resident": False})


# ----------------------------------------------------------------------------
# Public API (matches InnerProductDecoder.forward semantics)
# ----------------------------------------------------------------------------

def inner_product_decoder(z, dropout=0.0, *, training=False, rng=None,
                          out_dtype=jnp.float32, tm=None, tn=None,
                          vmem_limit_bytes=None, single_block_max_n=None,
                          resident_cols=None, single_buffer_resident=True):
    """adj = sigmoid(dropout(z) @ dropout(z).T), z: (N, D).

    out_dtype defaults to float32 for exact parity with the PyTorch module.
    Pass out_dtype=jnp.bfloat16 to halve the N^2 HBM writeback (the binding
    resource) -- roughly 2x wall-clock on large N on all generations.
    """
    z = z.astype(jnp.float32)
    if training and dropout > 0.0:
        if rng is None:
            raise ValueError("rng is required for dropout in training mode")
        # F.dropout semantics: zero with prob p, scale survivors by 1/(1-p);
        # the same dropped z is used for both operands of the inner product.
        keep = jax.random.bernoulli(rng, 1.0 - dropout, z.shape)
        z = jnp.where(keep, z / (1.0 - dropout), 0.0)

    cfg = _tpu_generation_config()
    tm = cfg["tm"] if tm is None else tm
    tn = cfg["tn"] if tn is None else tn
    if vmem_limit_bytes is None:
        vmem_limit_bytes = cfg["vmem_limit_bytes"]
    if single_block_max_n is None:
        single_block_max_n = cfg["single_block_max_n"]

    n = z.shape[0]
    if n <= single_block_max_n or n < 128:
        return _decode_single_block(z, out_dtype=out_dtype)
    return _decode_tiled_safe(z, tm=tm, tn=tn, out_dtype=out_dtype,
                              resident_cols=resident_cols,
                              vmem_limit_bytes=vmem_limit_bytes,
                              single_buffer_resident=single_buffer_resident)


# ----------------------------------------------------------------------------
# Demo / self-test
# ----------------------------------------------------------------------------

if __name__ == "__main__":
    key = jax.random.PRNGKey(0)

    # Small latent matrix (N nodes, D latent dims) -> single-block path.
    N, D = 256, 32
    z = jax.random.normal(key, (N, D), dtype=jnp.float32)
    adj = inner_product_decoder(z, dropout=0.1, training=False)
    jax.block_until_ready(adj)
    ref = jax.nn.sigmoid(z @ z.T)
    assert adj.shape == (N, N)
    assert float(jnp.max(jnp.abs(adj - ref))) < 2e-5

    # bf16 writeback (the recommended perf setting: halves HBM write traffic).
    adj_bf16 = inner_product_decoder(z, out_dtype=jnp.bfloat16)
    jax.block_until_ready(adj_bf16)
    assert float(jnp.max(jnp.abs(adj_bf16.astype(jnp.float32) - ref))) < 1e-2

    # Tiled path with small tiles and a non-divisible N: exercises the cdiv /
    # partial-block machinery, the resident column operand (with the
    # single-buffer spec + safe fallback), and the streaming column operand.
    N2 = 640
    z2 = jax.random.normal(jax.random.PRNGKey(1), (N2, D), dtype=jnp.float32)
    ref2 = jax.nn.sigmoid(z2 @ z2.T)

    adj2 = _decode_tiled_safe(z2, tm=256, tn=512, out_dtype=jnp.float32,
                              resident_cols=True,
                              vmem_limit_bytes=32 * _MIB)
    jax.block_until_ready(adj2)
    assert float(jnp.max(jnp.abs(adj2 - ref2))) < 2e-5

    adj3 = _decode_tiled(z2, tm=256, tn=512, out_dtype=jnp.float32,
                         resident_cols=False,
                         vmem_limit_bytes=32 * _MIB,
                         single_buffer_resident=False)
    jax.block_until_ready(adj3)
    assert float(jnp.max(jnp.abs(adj3 - ref2))) < 2e-5

    # Auto per-generation dispatch (single-block on v5e/v6e, tiled on v7x).
    adj4 = inner_product_decoder(z2)
    jax.block_until_ready(adj4)
    assert float(jnp.max(jnp.abs(adj4 - ref2))) < 2e-5

    # Training-mode dropout path (elementwise JAX glue around the kernel).
    adj5 = inner_product_decoder(z, dropout=0.5, training=True,
                                 rng=jax.random.PRNGKey(2))
    jax.block_until_ready(adj5)
    assert adj5.shape == (N, N)

    print("KERNEL_OK")
</pallas_src>

<mosaic_0001>
module attributes {stable_mosaic.version = 11 : i64} {
  func.func @_single_block_kernel(%arg0: memref<256x32xf32, #tpu.memory_space<vmem>>, %arg1: memref<256x256xf32, #tpu.memory_space<vmem>>) attributes {dimension_semantics = [], scalar_prefetch = 0 : i64, scratch_operands = 0 : i64, tpu.core_type = #tpu.core_type<tc>} {
    %c0 = arith.constant 0 : index
    %c0_0 = arith.constant 0 : index
    %0 = vector.load %arg0[%c0, %c0_0] : memref<256x32xf32, #tpu.memory_space<vmem>>, vector<256x32xf32>
    %c0_1 = arith.constant 0 : index
    %c0_2 = arith.constant 0 : index
    %1 = vector.load %arg0[%c0_1, %c0_2] : memref<256x32xf32, #tpu.memory_space<vmem>>, vector<256x32xf32>
    %cst = arith.constant dense<0.000000e+00> : vector<256x256xf32>
    %2 = tpu.matmul %0, %1, %cst {dimension_numbers = #tpu.dot_dimension_numbers<[1], [1], [0], [0], [0, 0, 1, 0], [], []>} : vector<256x32xf32>, vector<256x32xf32>, vector<256x256xf32> -> vector<256x256xf32>
    %cst_3 = arith.constant 5.000000e-01 : f32
    %3 = vector.broadcast %cst_3 : f32 to vector<256x256xf32>
    %4 = arith.mulf %3, %2 : vector<256x256xf32>
    %5 = math.tanh %4 : vector<256x256xf32>
    %cst_4 = arith.constant 5.000000e-01 : f32
    %6 = vector.broadcast %cst_4 : f32 to vector<256x256xf32>
    %7 = arith.mulf %6, %5 : vector<256x256xf32>
    %cst_5 = arith.constant 5.000000e-01 : f32
    %8 = vector.broadcast %cst_5 : f32 to vector<256x256xf32>
    %9 = arith.addf %7, %8 : vector<256x256xf32>
    %c0_6 = arith.constant 0 : index
    %c0_7 = arith.constant 0 : index
    %10 = vector.load %arg1[%c0_6, %c0_7] : memref<256x256xf32, #tpu.memory_space<vmem>>, vector<256x256xf32>
    tpu.vector_store %arg1[%c0_6, %c0_7], %9 {strides = array<i32>} : memref<256x256xf32, #tpu.memory_space<vmem>>, vector<256x256xf32>,
    return
  }
}

</mosaic_0001>

<llo_original>
// kernel: _decode_single_block.1
$region0: #{_decode_single_block.1}
  #allocation0 [shape = 'u32[]', space=smem, size = 0x4, offset = 0x4, fixed_abs, tag = 'smem constant byte address 0x4 - core index']
  #allocation1 [shape = 'u32[144,128]{1,0:T(1,128)}', space=vmem, size = 0x12000, scoped, tag = 'internal scratch']
  %s0 = inlined_call_operand.vmem [shape: f32[256,32], index: 0, kind: input, shape index: {}]
  %s1 = inlined_call_operand.hbm [shape: f32[256,256], index: 1, kind: output, shape index: {}]
  %s2 = sld [smem:[#allocation0]]
  $region14: #{_decode_single_block.1} parent=0
    _
  %s4 = ssub.s32 1, %s2
  %s5 = scalar_select 0, %s4, %s2
  $region1: #{_decode_single_block.1} parent=0
    #allocation2 [shape = 'u8[262144]{0}', space=vmem, size = 0x40000, scoped, tag = 'output window, operand 0, single buffered']
    #allocation3 [shape = 's32[1]{0}', space=sflag, size = 0x4, scoped, tag = 'scoped memory for _decode_single_block.1']
    %6 = vsyncpa [#allocation3], 0
    // Predicated region
    $region2: #{_decode_single_block.1} parent=1 // pred_check
      _
    $region3: #{_decode_single_block.1} parent=1 // pred_check_branch
      %8 = sbr.rel (0) target = $region5
    $region4: #{_decode_single_block.1} parent=1 // pred_region
      _
    $region5: #{_decode_single_block.1} parent=1 // pred_fallthru
      _
    %v9 = vld [vmem:[%s0] sm:$0xff]
    %v10 = vld [vmem:[%s0 + $0x8] sm:$0xff]
    %v11 = vld [vmem:[%s0 + $0x10] sm:$0xff]
    %v12 = vld [vmem:[%s0 + $0x18] sm:$0xff]
    %v13 = vld [vmem:[%s0 + $0x20] sm:$0xff]
    %v14 = vld [vmem:[%s0 + $0x28] sm:$0xff]
    %v15 = vld [vmem:[%s0 + $0x30] sm:$0xff]
    %v16 = vld [vmem:[%s0 + $0x38] sm:$0xff]
    %v17 = vld [vmem:[%s0 + $0x40] sm:$0xff]
    %v18 = vld [vmem:[%s0 + $0x48] sm:$0xff]
    %v19 = vld [vmem:[%s0 + $0x50] sm:$0xff]
    %v20 = vld [vmem:[%s0 + $0x58] sm:$0xff]
    %v21 = vld [vmem:[%s0 + $0x60] sm:$0xff]
    %v22 = vld [vmem:[%s0 + $0x68] sm:$0xff]
    %v23 = vld [vmem:[%s0 + $0x70] sm:$0xff]
    %v24 = vld [vmem:[%s0 + $0x78] sm:$0xff]
    %v25 = vld [vmem:[%s0 + $0x80] sm:$0xff]
    %v26 = vld [vmem:[%s0 + $0x88] sm:$0xff]
    %v27 = vld [vmem:[%s0 + $0x90] sm:$0xff]
    %v28 = vld [vmem:[%s0 + $0x98] sm:$0xff]
    %v29 = vld [vmem:[%s0 + $0xa0] sm:$0xff]
    %v30 = vld [vmem:[%s0 + $0xa8] sm:$0xff]
    %v31 = vld [vmem:[%s0 + $0xb0] sm:$0xff]
    %v32 = vld [vmem:[%s0 + $0xb8] sm:$0xff]
    %v33 = vld [vmem:[%s0 + $0xc0] sm:$0xff]
    %v34 = vld [vmem:[%s0 + $0xc8] sm:$0xff]
    %v35 = vld [vmem:[%s0 + $0xd0] sm:$0xff]
    %v36 = vld [vmem:[%s0 + $0xd8] sm:$0xff]
    %v37 = vld [vmem:[%s0 + $0xe0] sm:$0xff]
    %v38 = vld [vmem:[%s0 + $0xe8] sm:$0xff]
    %v39 = vld [vmem:[%s0 + $0xf0] sm:$0xff]
    %v40 = vld [vmem:[%s0 + $0xf8] sm:$0xff]
    %vm41 = vcmask 261120
    %v43 = vsel %vm41, %v9, 0
    %v46 = vsel %vm41, %v10, 0
    %v49 = vsel %vm41, %v11, 0
    %v52 = vsel %vm41, %v12, 0
    %v55 = vsel %vm41, %v13, 0
    %v58 = vsel %vm41, %v14, 0
    %v61 = vsel %vm41, %v15, 0
    %v64 = vsel %vm41, %v16, 0
    %v67 = vsel %vm41, %v17, 0
    %v70 = vsel %vm41, %v18, 0
    %v73 = vsel %vm41, %v19, 0
    %v76 = vsel %vm41, %v20, 0
    %v79 = vsel %vm41, %v21, 0
    %v82 = vsel %vm41, %v22, 0
    %v85 = vsel %vm41, %v23, 0
    %v88 = vsel %vm41, %v24, 0
    %v91 = vsel %vm41, %v25, 0
    %v94 = vsel %vm41, %v26, 0
    %v97 = vsel %vm41, %v27, 0
    %v100 = vsel %vm41, %v28, 0
    %v103 = vsel %vm41, %v29, 0
    %v106 = vsel %vm41, %v30, 0
    %v109 = vsel %vm41, %v31, 0
    %v112 = vsel %vm41, %v32, 0
    %v115 = vsel %vm41, %v33, 0
    %v118 = vsel %vm41, %v34, 0
    %v121 = vsel %vm41, %v35, 0
    %v124 = vsel %vm41, %v36, 0
    %v127 = vsel %vm41, %v37, 0
    %v130 = vsel %vm41, %v38, 0
    %v133 = vsel %vm41, %v39, 0
    %v136 = vsel %vm41, %v40, 0
    %138 = vmatprep.subr.mxu0 0.0
    %139 = vmatpush1.xpose.msra.mxu0 %v43
    %140 = vmatprep.subr.mxu0 0.0
    %141 = vmatpush1.xpose.msra.mxu0 %v46
    %142 = vmatprep.subr.mxu0 0.0
    %143 = vmatpush1.xpose.msra.mxu0 %v49
    %144 = vmatprep.subr.mxu0 0.0
    %145 = vmatpush1.xpose.msra.mxu0 %v52
    %146 = vmatprep.subr.mxu0 0.0
    %147 = vmatpush1.xpose.msra.mxu0 %v55
    %148 = vmatprep.subr.mxu0 0.0
    %149 = vmatpush1.xpose.msra.mxu0 %v58
    %150 = vmatprep.subr.mxu0 0.0
    %151 = vmatpush1.xpose.msra.mxu0 %v61
    %152 = vmatprep.subr.mxu0 0.0
    %153 = vmatpush1.xpose.msra.mxu0 %v64
    %154 = vmatprep.subr.mxu0 0.0
    %155 = vmatpush1.xpose.msra.mxu0 %v67
    %156 = vmatprep.subr.mxu0 0.0
    %157 = vmatpush1.xpose.msra.mxu0 %v70
    %158 = vmatprep.subr.mxu0 0.0
    %159 = vmatpush1.xpose.msra.mxu0 %v73
    %160 = vmatprep.subr.mxu0 0.0
    %161 = vmatpush1.xpose.msra.mxu0 %v76
    %162 = vmatprep.subr.mxu0 0.0
    %163 = vmatpush1.xpose.msra.mxu0 %v79
    %164 = vmatprep.subr.mxu0 0.0
    %165 = vmatpush1.xpose.msra.mxu0 %v82
    %166 = vmatprep.subr.mxu0 0.0
    %167 = vmatpush1.xpose.msra.mxu0 %v85
    %168 = vmatprep.subr.mxu0 0.0
    %169 = vmatpush1.xpose.msra.mxu0 %v88
    %170 = vmatprep.subr.mxu0 0.0
    %171 = vmatpush1.xpose.msra.mxu0 %v91
    %172 = vmatprep.subr.mxu0 0.0
    %173 = vmatpush1.xpose.msra.mxu0 %v94
    %174 = vmatprep.subr.mxu0 0.0
    %175 = vmatpush1.xpose.msra.mxu0 %v97
    %176 = vmatprep.subr.mxu0 0.0
    %177 = vmatpush1.xpose.msra.mxu0 %v100
    %178 = vmatprep.subr.mxu0 0.0
    %179 = vmatpush1.xpose.msra.mxu0 %v103
    %180 = vmatprep.subr.mxu0 0.0
    %181 = vmatpush1.xpose.msra.mxu0 %v106
    %182 = vmatprep.subr.mxu0 0.0
    %183 = vmatpush1.xpose.msra.mxu0 %v109
    %184 = vmatprep.subr.mxu0 0.0
    %185 = vmatpush1.xpose.msra.mxu0 %v112
    %186 = vmatprep.subr.mxu0 0.0
    %187 = vmatpush1.xpose.msra.mxu0 %v115
    %188 = vmatprep.subr.mxu0 0.0
    %189 = vmatpush1.xpose.msra.mxu0 %v118
    %190 = vmatprep.subr.mxu0 0.0
    %191 = vmatpush1.xpose.msra.mxu0 %v121
    %192 = vmatprep.subr.mxu0 0.0
    %193 = vmatpush1.xpose.msra.mxu0 %v124
    %194 = vmatprep.subr.mxu0 0.0
    %195 = vmatpush1.xpose.msra.mxu0 %v127
    %196 = vmatprep.subr.mxu0 0.0
    %197 = vmatpush1.xpose.msra.mxu0 %v130
    %198 = vmatprep.subr.mxu0 0.0
    %199 = vmatpush1.xpose.msra.mxu0 %v133
    %200 = vmatprep.subr.mxu0 0.0
    %201 = vmatpush1.xpose.msra.mxu0 %v136
    %202 = vmatprep.mubr.f32.mxu0 0.0
    %203 = vmatmul.mubr.f32.gmra.mrb[0].mxu0 %v43
    %v204 = vpop.f32.mrb[0].mxu0
    %v205 = vadd.f32 0.0, %v204
    %v206 = vpop.f32.mrb[0].mxu0
    %v207 = vadd.f32 0.0, %v206
    %208 = vmatprep.mubr.f32.mxu0 0.0
    %209 = vmatmul.mubr.f32.gmra.mrb[0].mxu0 %v46
    %v210 = vpop.f32.mrb[0].mxu0
    %v211 = vadd.f32 0.0, %v210
    %v212 = vpop.f32.mrb[0].mxu0
    %v213 = vadd.f32 0.0, %v212
    %214 = vmatprep.mubr.f32.mxu0 0.0
    %215 = vmatmul.mubr.f32.gmra.mrb[0].mxu0 %v49
    %v216 = vpop.f32.mrb[0].mxu0
    %v217 = vadd.f32 0.0, %v216
    %v218 = vpop.f32.mrb[0].mxu0
    %v219 = vadd.f32 0.0, %v218
    %220 = vmatprep.mubr.f32.mxu0 0.0
    %221 = vmatmul.mubr.f32.gmra.mrb[0].mxu0 %v52
    %v222 = vpop.f32.mrb[0].mxu0
    %v223 = vadd.f32 0.0, %v222
    %v224 = vpop.f32.mrb[0].mxu0
    %v225 = vadd.f32 0.0, %v224
    %226 = vmatprep.mubr.f32.mxu0 0.0
    %227 = vmatmul.mubr.f32.gmra.mrb[0].mxu0 %v55
    %v228 = vpop.f32.mrb[0].mxu0
    %v229 = vadd.f32 0.0, %v228
    %v230 = vpop.f32.mrb[0].mxu0
    %v231 = vadd.f32 0.0, %v230
    %232 = vmatprep.mubr.f32.mxu0 0.0
    %233 = vmatmul.mubr.f32.gmra.mrb[0].mxu0 %v58
    %v234 = vpop.f32.mrb[0].mxu0
    %v235 = vadd.f32 0.0, %v234
    %v236 = vpop.f32.mrb[0].mxu0
    %v237 = vadd.f32 0.0, %v236
    %238 = vmatprep.mubr.f32.mxu0 0.0
    %239 = vmatmul.mubr.f32.gmra.mrb[0].mxu0 %v61
    %v240 = vpop.f32.mrb[0].mxu0
    %v241 = vadd.f32 0.0, %v240
    %v242 = vpop.f32.mrb[0].mxu0
    %v243 = vadd.f32 0.0, %v242
    %244 = vmatprep.mubr.f32.mxu0 0.0
    %245 = vmatmul.mubr.f32.gmra.mrb[0].mxu0 %v64
    %v246 = vpop.f32.mrb[0].mxu0
    %v247 = vadd.f32 0.0, %v246
    %v248 = vpop.f32.mrb[0].mxu0
    %v249 = vadd.f32 0.0, %v248
    %250 = vmatprep.mubr.f32.mxu0 0.0
    %251 = vmatmul.mubr.f32.gmra.mrb[0].mxu0 %v67
    %v252 = vpop.f32.mrb[0].mxu0
    %v253 = vadd.f32 0.0, %v252
    %v254 = vpop.f32.mrb[0].mxu0
    %v255 = vadd.f32 0.0, %v254
    %256 = vmatprep.mubr.f32.mxu0 0.0
    %257 = vmatmul.mubr.f32.gmra.mrb[0].mxu0 %v70
    %v258 = vpop.f32.mrb[0].mxu0
    %v259 = vadd.f32 0.0, %v258
    %v260 = vpop.f32.mrb[0].mxu0
    %v261 = vadd.f32 0.0, %v260
    %262 = vmatprep.mubr.f32.mxu0 0.0
    %263 = vmatmul.mubr.f32.gmra.mrb[0].mxu0 %v73
    %v264 = vpop.f32.mrb[0].mxu0
    %v265 = vadd.f32 0.0, %v264
    %v266 = vpop.f32.mrb[0].mxu0
    %v267 = vadd.f32 0.0, %v266
    %268 = vmatprep.mubr.f32.mxu0 0.0
    %269 = vmatmul.mubr.f32.gmra.mrb[0].mxu0 %v76
    %v270 = vpop.f32.mrb[0].mxu0
    %v271 = vadd.f32 0.0, %v270
    %v272 = vpop.f32.mrb[0].mxu0
    %v273 = vadd.f32 0.0, %v272
    %274 = vmatprep.mubr.f32.mxu0 0.0
    %275 = vmatmul.mubr.f32.gmra.mrb[0].mxu0 %v79
    %v276 = vpop.f32.mrb[0].mxu0
    %v277 = vadd.f32 0.0, %v276
    %v278 = vpop.f32.mrb[0].mxu0
    %v279 = vadd.f32 0.0, %v278
    %280 = vmatprep.mubr.f32.mxu0 0.0
    %281 = vmatmul.mubr.f32.gmra.mrb[0].mxu0 %v82
    %v282 = vpop.f32.mrb[0].mxu0
    %v283 = vadd.f32 0.0, %v282
    %v284 = vpop.f32.mrb[0].mxu0
    %v285 = vadd.f32 0.0, %v284
    %286 = vmatprep.mubr.f32.mxu0 0.0
    %287 = vmatmul.mubr.f32.gmra.mrb[0].mxu0 %v85
    %v288 = vpop.f32.mrb[0].mxu0
    %v289 = vadd.f32 0.0, %v288
    %v290 = vpop.f32.mrb[0].mxu0
    %v291 = vadd.f32 0.0, %v290
    %292 = vmatprep.mubr.f32.mxu0 0.0
    %293 = vmatmul.mubr.f32.gmra.mrb[0].mxu0 %v88
    %v294 = vpop.f32.mrb[0].mxu0
    %v295 = vadd.f32 0.0, %v294
    %v296 = vpop.f32.mrb[0].mxu0
    %v297 = vadd.f32 0.0, %v296
    %298 = vmatprep.mubr.f32.mxu0 0.0
    %299 = vmatmul.mubr.f32.gmra.mrb[0].mxu0 %v91
    %v300 = vpop.f32.mrb[0].mxu0
    %v301 = vadd.f32 0.0, %v300
    %v302 = vpop.f32.mrb[0].mxu0
    %v303 = vadd.f32 0.0, %v302
    %304 = vmatprep.mubr.f32.mxu0 0.0
    %305 = vmatmul.mubr.f32.gmra.mrb[0].mxu0 %v94
    %v306 = vpop.f32.mrb[0].mxu0
    %v307 = vadd.f32 0.0, %v306
    %v308 = vpop.f32.mrb[0].mxu0
    %v309 = vadd.f32 0.0, %v308
    %310 = vmatprep.mubr.f32.mxu0 0.0
    %311 = vmatmul.mubr.f32.gmra.mrb[0].mxu0 %v97
    %v312 = vpop.f32.mrb[0].mxu0
    %v313 = vadd.f32 0.0, %v312
    %v314 = vpop.f32.mrb[0].mxu0
    %v315 = vadd.f32 0.0, %v314
    %316 = vmatprep.mubr.f32.mxu0 0.0
    %317 = vmatmul.mubr.f32.gmra.mrb[0].mxu0 %v100
    %v318 = vpop.f32.mrb[0].mxu0
    %v319 = vadd.f32 0.0, %v318
    %v320 = vpop.f32.mrb[0].mxu0
    %v321 = vadd.f32 0.0, %v320
    %322 = vmatprep.mubr.f32.mxu0 0.0
    %323 = vmatmul.mubr.f32.gmra.mrb[0].mxu0 %v103
    %v324 = vpop.f32.mrb[0].mxu0
    %v325 = vadd.f32 0.0, %v324
    %v326 = vpop.f32.mrb[0].mxu0
    %v327 = vadd.f32 0.0, %v326
    %328 = vmatprep.mubr.f32.mxu0 0.0
    %329 = vmatmul.mubr.f32.gmra.mrb[0].mxu0 %v106
    %v330 = vpop.f32.mrb[0].mxu0
    %v331 = vadd.f32 0.0, %v330
    %v332 = vpop.f32.mrb[0].mxu0
    %v333 = vadd.f32 0.0, %v332
    %334 = vmatprep.mubr.f32.mxu0 0.0
    %335 = vmatmul.mubr.f32.gmra.mrb[0].mxu0 %v109
    %v336 = vpop.f32.mrb[0].mxu0
    %v337 = vadd.f32 0.0, %v336
    %v338 = vpop.f32.mrb[0].mxu0
    %v339 = vadd.f32 0.0, %v338
    %340 = vmatprep.mubr.f32.mxu0 0.0
    %341 = vmatmul.mubr.f32.gmra.mrb[0].mxu0 %v112
    %v342 = vpop.f32.mrb[0].mxu0
    %v343 = vadd.f32 0.0, %v342
    %v344 = vpop.f32.mrb[0].mxu0
    %v345 = vadd.f32 0.0, %v344
    %346 = vmatprep.mubr.f32.mxu0 0.0
    %347 = vmatmul.mubr.f32.gmra.mrb[0].mxu0 %v115
    %v348 = vpop.f32.mrb[0].mxu0
    %v349 = vadd.f32 0.0, %v348
    %v350 = vpop.f32.mrb[0].mxu0
    %v351 = vadd.f32 0.0, %v350
    %352 = vmatprep.mubr.f32.mxu0 0.0
    %353 = vmatmul.mubr.f32.gmra.mrb[0].mxu0 %v118
    %v354 = vpop.f32.mrb[0].mxu0
    %v355 = vadd.f32 0.0, %v354
    %v356 = vpop.f32.mrb[0].mxu0
    %v357 = vadd.f32 0.0, %v356
    %358 = vmatprep.mubr.f32.mxu0 0.0
    %359 = vmatmul.mubr.f32.gmra.mrb[0].mxu0 %v121
    %v360 = vpop.f32.mrb[0].mxu0
    %v361 = vadd.f32 0.0, %v360
    %v362 = vpop.f32.mrb[0].mxu0
    %v363 = vadd.f32 0.0, %v362
    %364 = vmatprep.mubr.f32.mxu0 0.0
    %365 = vmatmul.mubr.f32.gmra.mrb[0].mxu0 %v124
    %v366 = vpop.f32.mrb[0].mxu0
    %v367 = vadd.f32 0.0, %v366
    %v368 = vpop.f32.mrb[0].mxu0
    %v369 = vadd.f32 0.0, %v368
    %370 = vmatprep.mubr.f32.mxu0 0.0
    %371 = vmatmul.mubr.f32.gmra.mrb[0].mxu0 %v127
    %v372 = vpop.f32.mrb[0].mxu0
    %v373 = vadd.f32 0.0, %v372
    %v374 = vpop.f32.mrb[0].mxu0
    %v375 = vadd.f32 0.0, %v374
    %376 = vmatprep.mubr.f32.mxu0 0.0
    %377 = vmatmul.mubr.f32.gmra.mrb[0].mxu0 %v130
    %v378 = vpop.f32.mrb[0].mxu0
    %v379 = vadd.f32 0.0, %v378
    %v380 = vpop.f32.mrb[0].mxu0
    %v381 = vadd.f32 0.0, %v380
    %382 = vmatprep.mubr.f32.mxu0 0.0
    %383 = vmatmul.mubr.f32.gmra.mrb[0].mxu0 %v133
    %v384 = vpop.f32.mrb[0].mxu0
    %v385 = vadd.f32 0.0, %v384
    %v386 = vpop.f32.mrb[0].mxu0
    %v387 = vadd.f32 0.0, %v386
    %388 = vmatprep.mubr.f32.mxu0 0.0
    %389 = vmatmul.mubr.f32.gmra.mrb[0].mxu0 %v136
    %v390 = vpop.f32.mrb[0].mxu0
    %v391 = vadd.f32 0.0, %v390
    %v392 = vpop.f32.mrb[0].mxu0
    %v393 = vadd.f32 0.0, %v392
    %394 = vdwg.mxu0
    %v395 = vmul.f32 %v205, 0.5
    %v396 = vmul.f32 %v207, 0.5
    %v397 = vmul.f32 %v211, 0.5
    %v398 = vmul.f32 %v213, 0.5
    %v399 = vmul.f32 %v217, 0.5
    %v400 = vmul.f32 %v219, 0.5
    %v401 = vmul.f32 %v223, 0.5
    %v402 = vmul.f32 %v225, 0.5
    %v403 = vmul.f32 %v229, 0.5
    %v404 = vmul.f32 %v231, 0.5
    %v405 = vmul.f32 %v235, 0.5
    %v406 = vmul.f32 %v237, 0.5
    %v407 = vmul.f32 %v241, 0.5
    %v408 = vmul.f32 %v243, 0.5
    %v409 = vmul.f32 %v247, 0.5
    %v410 = vmul.f32 %v249, 0.5
    %v411 = vmul.f32 %v253, 0.5
    %v412 = vmul.f32 %v255, 0.5
    %v413 = vmul.f32 %v259, 0.5
    %v414 = vmul.f32 %v261, 0.5
    %v415 = vmul.f32 %v265, 0.5
    %v416 = vmul.f32 %v267, 0.5
    %v417 = vmul.f32 %v271, 0.5
    %v418 = vmul.f32 %v273, 0.5
    %v419 = vmul.f32 %v277, 0.5
    %v420 = vmul.f32 %v279, 0.5
    %v421 = vmul.f32 %v283, 0.5
    %v422 = vmul.f32 %v285, 0.5
    %v423 = vmul.f32 %v289, 0.5
    %v424 = vmul.f32 %v291, 0.5
    %v425 = vmul.f32 %v295, 0.5
    %v426 = vmul.f32 %v297, 0.5
    %v427 = vmul.f32 %v301, 0.5
    %v428 = vmul.f32 %v303, 0.5
    %v429 = vmul.f32 %v307, 0.5
    %v430 = vmul.f32 %v309, 0.5
    %v431 = vmul.f32 %v313, 0.5
    %v432 = vmul.f32 %v315, 0.5
    %v433 = vmul.f32 %v319, 0.5
    %v434 = vmul.f32 %v321, 0.5
    %v435 = vmul.f32 %v325, 0.5
    %v436 = vmul.f32 %v327, 0.5
    %v437 = vmul.f32 %v331, 0.5
    %v438 = vmul.f32 %v333, 0.5
    %v439 = vmul.f32 %v337, 0.5
    %v440 = vmul.f32 %v339, 0.5
    %v441 = vmul.f32 %v343, 0.5
    %v442 = vmul.f32 %v345, 0.5
    %v443 = vmul.f32 %v349, 0.5
    %v444 = vmul.f32 %v351, 0.5
    %v445 = vmul.f32 %v355, 0.5
    %v446 = vmul.f32 %v357, 0.5
    %v447 = vmul.f32 %v361, 0.5
    %v448 = vmul.f32 %v363, 0.5
    %v449 = vmul.f32 %v367, 0.5
    %v450 = vmul.f32 %v369, 0.5
    %v451 = vmul.f32 %v373, 0.5
    %v452 = vmul.f32 %v375, 0.5
    %v453 = vmul.f32 %v379, 0.5
    %v454 = vmul.f32 %v381, 0.5
    %v455 = vmul.f32 %v385, 0.5
    %v456 = vmul.f32 %v387, 0.5
    %v457 = vmul.f32 %v391, 0.5
    %v458 = vmul.f32 %v393, 0.5
    %v459 = vtanh.pop %v395
    %v460 = vtanh.pop %v396
    %v461 = vtanh.pop %v397
    %v462 = vtanh.pop %v398
    %v463 = vtanh.pop %v399
    %v464 = vtanh.pop %v400
    %v465 = vtanh.pop %v401
    %v466 = vtanh.pop %v402
    %v467 = vtanh.pop %v403
    %v468 = vtanh.pop %v404
    %v469 = vtanh.pop %v405
    %v470 = vtanh.pop %v406
    %v471 = vtanh.pop %v407
    %v472 = vtanh.pop %v408
    %v473 = vtanh.pop %v409
    %v474 = vtanh.pop %v410
    %v475 = vtanh.pop %v411
    %v476 = vtanh.pop %v412
    %v477 = vtanh.pop %v413
    %v478 = vtanh.pop %v414
    %v479 = vtanh.pop %v415
    %v480 = vtanh.pop %v416
    %v481 = vtanh.pop %v417
    %v482 = vtanh.pop %v418
    %v483 = vtanh.pop %v419
    %v484 = vtanh.pop %v420
    %v485 = vtanh.pop %v421
    %v486 = vtanh.pop %v422
    %v487 = vtanh.pop %v423
    %v488 = vtanh.pop %v424
    %v489 = vtanh.pop %v425
    %v490 = vtanh.pop %v426
    %v491 = vtanh.pop %v427
    %v492 = vtanh.pop %v428
    %v493 = vtanh.pop %v429
    %v494 = vtanh.pop %v430
    %v495 = vtanh.pop %v431
    %v496 = vtanh.pop %v432
    %v497 = vtanh.pop %v433
    %v498 = vtanh.pop %v434
    %v499 = vtanh.pop %v435
    %v500 = vtanh.pop %v436
    %v501 = vtanh.pop %v437
    %v502 = vtanh.pop %v438
    %v503 = vtanh.pop %v439
    %v504 = vtanh.pop %v440
    %v505 = vtanh.pop %v441
    %v506 = vtanh.pop %v442
    %v507 = vtanh.pop %v443
    %v508 = vtanh.pop %v444
    %v509 = vtanh.pop %v445
    %v510 = vtanh.pop %v446
    %v511 = vtanh.pop %v447
    %v512 = vtanh.pop %v448
    %v513 = vtanh.pop %v449
    %v514 = vtanh.pop %v450
    %v515 = vtanh.pop %v451
    %v516 = vtanh.pop %v452
    %v517 = vtanh.pop %v453
    %v518 = vtanh.pop %v454
    %v519 = vtanh.pop %v455
    %v520 = vtanh.pop %v456
    %v521 = vtanh.pop %v457
    %v522 = vtanh.pop %v458
    %v523 = vmul.f32 %v459, 0.5
    %v524 = vmul.f32 %v460, 0.5
    %v525 = vmul.f32 %v461, 0.5
    %v526 = vmul.f32 %v462, 0.5
    %v527 = vmul.f32 %v463, 0.5
    %v528 = vmul.f32 %v464, 0.5
    %v529 = vmul.f32 %v465, 0.5
    %v530 = vmul.f32 %v466, 0.5
    %v531 = vmul.f32 %v467, 0.5
    %v532 = vmul.f32 %v468, 0.5
    %v533 = vmul.f32 %v469, 0.5
    %v534 = vmul.f32 %v470, 0.5
    %v535 = vmul.f32 %v471, 0.5
    %v536 = vmul.f32 %v472, 0.5
    %v537 = vmul.f32 %v473, 0.5
    %v538 = vmul.f32 %v474, 0.5
    %v539 = vmul.f32 %v475, 0.5
    %v540 = vmul.f32 %v476, 0.5
    %v541 = vmul.f32 %v477, 0.5
    %v542 = vmul.f32 %v478, 0.5
    %v543 = vmul.f32 %v479, 0.5
    %v544 = vmul.f32 %v480, 0.5
    %v545 = vmul.f32 %v481, 0.5
    %v546 = vmul.f32 %v482, 0.5
    %v547 = vmul.f32 %v483, 0.5
    %v548 = vmul.f32 %v484, 0.5
    %v549 = vmul.f32 %v485, 0.5
    %v550 = vmul.f32 %v486, 0.5
    %v551 = vmul.f32 %v487, 0.5
    %v552 = vmul.f32 %v488, 0.5
    %v553 = vmul.f32 %v489, 0.5
    %v554 = vmul.f32 %v490, 0.5
    %v555 = vmul.f32 %v491, 0.5
    %v556 = vmul.f32 %v492, 0.5
    %v557 = vmul.f32 %v493, 0.5
    %v558 = vmul.f32 %v494, 0.5
    %v559 = vmul.f32 %v495, 0.5
    %v560 = vmul.f32 %v496, 0.5
    %v561 = vmul.f32 %v497, 0.5
    %v562 = vmul.f32 %v498, 0.5
    %v563 = vmul.f32 %v499, 0.5
    %v564 = vmul.f32 %v500, 0.5
    %v565 = vmul.f32 %v501, 0.5
    %v566 = vmul.f32 %v502, 0.5
    %v567 = vmul.f32 %v503, 0.5
    %v568 = vmul.f32 %v504, 0.5
    %v569 = vmul.f32 %v505, 0.5
    %v570 = vmul.f32 %v506, 0.5
    %v571 = vmul.f32 %v507, 0.5
    %v572 = vmul.f32 %v508, 0.5
    %v573 = vmul.f32 %v509, 0.5
    %v574 = vmul.f32 %v510, 0.5
    %v575 = vmul.f32 %v511, 0.5
    %v576 = vmul.f32 %v512, 0.5
    %v577 = vmul.f32 %v513, 0.5
    %v578 = vmul.f32 %v514, 0.5
    %v579 = vmul.f32 %v515, 0.5
    %v580 = vmul.f32 %v516, 0.5
    %v581 = vmul.f32 %v517, 0.5
    %v582 = vmul.f32 %v518, 0.5
    %v583 = vmul.f32 %v519, 0.5
    %v584 = vmul.f32 %v520, 0.5
    %v585 = vmul.f32 %v521, 0.5
    %v586 = vmul.f32 %v522, 0.5
    %v587 = vadd.f32 %v523, 0.5
    %v588 = vadd.f32 %v524, 0.5
    %v589 = vadd.f32 %v525, 0.5
    %v590 = vadd.f32 %v526, 0.5
    %v591 = vadd.f32 %v527, 0.5
    %v592 = vadd.f32 %v528, 0.5
    %v593 = vadd.f32 %v529, 0.5
    %v594 = vadd.f32 %v530, 0.5
    %v595 = vadd.f32 %v531, 0.5
    %v596 = vadd.f32 %v532, 0.5
    %v597 = vadd.f32 %v533, 0.5
    %v598 = vadd.f32 %v534, 0.5
    %v599 = vadd.f32 %v535, 0.5
    %v600 = vadd.f32 %v536, 0.5
    %v601 = vadd.f32 %v537, 0.5
    %v602 = vadd.f32 %v538, 0.5
    %v603 = vadd.f32 %v539, 0.5
    %v604 = vadd.f32 %v540, 0.5
    %v605 = vadd.f32 %v541, 0.5
    %v606 = vadd.f32 %v542, 0.5
    %v607 = vadd.f32 %v543, 0.5
    %v608 = vadd.f32 %v544, 0.5
    %v609 = vadd.f32 %v545, 0.5
    %v610 = vadd.f32 %v546, 0.5
    %v611 = vadd.f32 %v547, 0.5
    %v612 = vadd.f32 %v548, 0.5
    %v613 = vadd.f32 %v549, 0.5
    %v614 = vadd.f32 %v550, 0.5
    %v615 = vadd.f32 %v551, 0.5
    %v616 = vadd.f32 %v552, 0.5
    %v617 = vadd.f32 %v553, 0.5
    %v618 = vadd.f32 %v554, 0.5
    %v619 = vadd.f32 %v555, 0.5
    %v620 = vadd.f32 %v556, 0.5
    %v621 = vadd.f32 %v557, 0.5
    %v622 = vadd.f32 %v558, 0.5
    %v623 = vadd.f32 %v559, 0.5
    %v624 = vadd.f32 %v560, 0.5
    %v625 = vadd.f32 %v561, 0.5
    %v626 = vadd.f32 %v562, 0.5
    %v627 = vadd.f32 %v563, 0.5
    %v628 = vadd.f32 %v564, 0.5
    %v629 = vadd.f32 %v565, 0.5
    %v630 = vadd.f32 %v566, 0.5
    %v631 = vadd.f32 %v567, 0.5
    %v632 = vadd.f32 %v568, 0.5
    %v633 = vadd.f32 %v569, 0.5
    %v634 = vadd.f32 %v570, 0.5
    %v635 = vadd.f32 %v571, 0.5
    %v636 = vadd.f32 %v572, 0.5
    %v637 = vadd.f32 %v573, 0.5
    %v638 = vadd.f32 %v574, 0.5
    %v639 = vadd.f32 %v575, 0.5
    %v640 = vadd.f32 %v576, 0.5
    %v641 = vadd.f32 %v577, 0.5
    %v642 = vadd.f32 %v578, 0.5
    %v643 = vadd.f32 %v579, 0.5
    %v644 = vadd.f32 %v580, 0.5
    %v645 = vadd.f32 %v581, 0.5
    %v646 = vadd.f32 %v582, 0.5
    %v647 = vadd.f32 %v583, 0.5
    %v648 = vadd.f32 %v584, 0.5
    %v649 = vadd.f32 %v585, 0.5
    %v650 = vadd.f32 %v586, 0.5
    %651 = vst [vmem:[#allocation2] sm:$0xff] %v587
    %652 = vst [vmem:[#allocation2 + $0x8] sm:$0xff] %v588
    %653 = vst [vmem:[#allocation2 + $0x10] sm:$0xff] %v589
    %654 = vst [vmem:[#allocation2 + $0x18] sm:$0xff] %v590
    %655 = vst [vmem:[#allocation2 + $0x20] sm:$0xff] %v591
    %656 = vst [vmem:[#allocation2 + $0x28] sm:$0xff] %v592
    %657 = vst [vmem:[#allocation2 + $0x30] sm:$0xff] %v593
    %658 = vst [vmem:[#allocation2 + $0x38] sm:$0xff] %v594
    %659 = vst [vmem:[#allocation2 + $0x40] sm:$0xff] %v595
    %660 = vst [vmem:[#allocation2 + $0x48] sm:$0xff] %v596
    %661 = vst [vmem:[#allocation2 + $0x50] sm:$0xff] %v597
    %662 = vst [vmem:[#allocation2 + $0x58] sm:$0xff] %v598
    %663 = vst [vmem:[#allocation2 + $0x60] sm:$0xff] %v599
    %664 = vst [vmem:[#allocation2 + $0x68] sm:$0xff] %v600
    %665 = vst [vmem:[#allocation2 + $0x70] sm:$0xff] %v601
    %666 = vst [vmem:[#allocation2 + $0x78] sm:$0xff] %v602
    %667 = vst [vmem:[#allocation2 + $0x80] sm:$0xff] %v603
    %668 = vst [vmem:[#allocation2 + $0x88] sm:$0xff] %v604
    %669 = vst [vmem:[#allocation2 + $0x90] sm:$0xff] %v605
    %670 = vst [vmem:[#allocation2 + $0x98] sm:$0xff] %v606
    %671 = vst [vmem:[#allocation2 + $0xa0] sm:$0xff] %v607
    %672 = vst [vmem:[#allocation2 + $0xa8] sm:$0xff] %v608
    %673 = vst [vmem:[#allocation2 + $0xb0] sm:$0xff] %v609
    %674 = vst [vmem:[#allocation2 + $0xb8] sm:$0xff] %v610
    %675 = vst [vmem:[#allocation2 + $0xc0] sm:$0xff] %v611
    %676 = vst [vmem:[#allocation2 + $0xc8] sm:$0xff] %v612
    %677 = vst [vmem:[#allocation2 + $0xd0] sm:$0xff] %v613
    %678 = vst [vmem:[#allocation2 + $0xd8] sm:$0xff] %v614
    %679 = vst [vmem:[#allocation2 + $0xe0] sm:$0xff] %v615
    %680 = vst [vmem:[#allocation2 + $0xe8] sm:$0xff] %v616
    %681 = vst [vmem:[#allocation2 + $0xf0] sm:$0xff] %v617
    %682 = vst [vmem:[#allocation2 + $0xf8] sm:$0xff] %v618
    %683 = vst [vmem:[#allocation2 + $0x100] sm:$0xff] %v619
    %684 = vst [vmem:[#allocation2 + $0x108] sm:$0xff] %v620
    %685 = vst [vmem:[#allocation2 + $0x110] sm:$0xff] %v621
    %686 = vst [vmem:[#allocation2 + $0x118] sm:$0xff] %v622
    %687 = vst [vmem:[#allocation2 + $0x120] sm:$0xff] %v623
    %688 = vst [vmem:[#allocation2 + $0x128] sm:$0xff] %v624
    %689 = vst [vmem:[#allocation2 + $0x130] sm:$0xff] %v625
    %690 = vst [vmem:[#allocation2 + $0x138] sm:$0xff] %v626
    %691 = vst [vmem:[#allocation2 + $0x140] sm:$0xff] %v627
    %692 = vst [vmem:[#allocation2 + $0x148] sm:$0xff] %v628
    %693 = vst [vmem:[#allocation2 + $0x150] sm:$0xff] %v629
    %694 = vst [vmem:[#allocation2 + $0x158] sm:$0xff] %v630
    %695 = vst [vmem:[#allocation2 + $0x160] sm:$0xff] %v631
    %696 = vst [vmem:[#allocation2 + $0x168] sm:$0xff] %v632
    %697 = vst [vmem:[#allocation2 + $0x170] sm:$0xff] %v633
    %698 = vst [vmem:[#allocation2 + $0x178] sm:$0xff] %v634
    %699 = vst [vmem:[#allocation2 + $0x180] sm:$0xff] %v635
    %700 = vst [vmem:[#allocation2 + $0x188] sm:$0xff] %v636
    %701 = vst [vmem:[#allocation2 + $0x190] sm:$0xff] %v637
    %702 = vst [vmem:[#allocation2 + $0x198] sm:$0xff] %v638
    %703 = vst [vmem:[#allocation2 + $0x1a0] sm:$0xff] %v639
    %704 = vst [vmem:[#allocation2 + $0x1a8] sm:$0xff] %v640
    %705 = vst [vmem:[#allocation2 + $0x1b0] sm:$0xff] %v641
    %706 = vst [vmem:[#allocation2 + $0x1b8] sm:$0xff] %v642
    %707 = vst [vmem:[#allocation2 + $0x1c0] sm:$0xff] %v643
    %708 = vst [vmem:[#allocation2 + $0x1c8] sm:$0xff] %v644
    %709 = vst [vmem:[#allocation2 + $0x1d0] sm:$0xff] %v645
    %710 = vst [vmem:[#allocation2 + $0x1d8] sm:$0xff] %v646
    %711 = vst [vmem:[#allocation2 + $0x1e0] sm:$0xff] %v647
    %712 = vst [vmem:[#allocation2 + $0x1e8] sm:$0xff] %v648
    %713 = vst [vmem:[#allocation2 + $0x1f0] sm:$0xff] %v649
    %714 = vst [vmem:[#allocation2 + $0x1f8] sm:$0xff] %v650
    // Predicated region
    $region6: #{_decode_single_block.1} parent=1 // pred_check
      _
    $region7: #{_decode_single_block.1} parent=1 // pred_check_branch
      %716 = sbr.rel (0) target = $region9
    $region8: #{_decode_single_block.1} parent=1 // pred_region
      %s718 = ssub.s32 8192, 8192
      %719 = vsyncadd [#allocation3], %s718
      %s720 = sshll.u32 [#allocation2], 4
      %s721 = int_to_ptr.vmem [resolvable:$true] %s720
      %726 = dma.vmem_to_hbm [thread:$0]  %s721, 8192, %s1, [#allocation3], 256, 256, 16
    $region9: #{_decode_single_block.1} parent=1 // pred_fallthru
      _
    // Predicated region
    $region10: #{_decode_single_block.1} parent=1 // pred_check
      _
    $region11: #{_decode_single_block.1} parent=1 // pred_check_branch
      %728 = sbr.rel (0) target = $region13
    $region12: #{_decode_single_block.1} parent=1 // pred_region
      %729 = dma.done [#allocation3], 8192
    $region13: #{_decode_single_block.1} parent=1 // pred_fallthru
      _
    %730 = vsyncpa [#allocation3], 1

</llo_original>
